<compile_context>
chip_gen: v7x
topology: tpu7x:2x2x1
jax: 0.10.0
libtpu: 0.0.40
codegen_flags: <defaults>
</compile_context>

<pallas_src>
import jax
import jax.numpy as jnp
from jax import lax
from jax.experimental import pallas as pl
from jax.experimental.pallas import tpu as pltpu


def _q_kernel(obs_ref, act_ref, w1o_ref, w1a_ref, b1_ref,
              w2_ref, b2_ref, w3_ref, b3_ref, out_ref):
    """One batch tile of Q(obs, act), batch along lanes.

    obs_ref : [tb, obs_dim] f32    act_ref : [tb, act_dim] f32
    w1o_ref : [h1, obs_dim] f32    w1a_ref : [h1, act_dim] f32   b1_ref : [h1, 1] f32
    w2_ref  : [h2, h1]      f32    b2_ref  : [h2, 1]       f32
    w3_ref  : [1, h2]       f32    b3_ref  : [1] f32 (SMEM scalar)
    out_ref : [1, tb]       f32    (lane-dense q values for this tile)
    """
    obs = obs_ref[...].astype(jnp.bfloat16)
    act = act_ref[...].astype(jnp.bfloat16)
    w1o = w1o_ref[...].astype(jnp.bfloat16)
    w1a = w1a_ref[...].astype(jnp.bfloat16)

    # Layer 1, concat fused: contract the feature dims of obs/act against the
    # split weight -> [h1, tb] (batch on lanes), f32 MXU accumulation.
    dn = (((1,), (1,)), ((), ()))
    h1 = lax.dot_general(w1o, obs, dn, preferred_element_type=jnp.float32)
    h1 = h1 + lax.dot_general(w1a, act, dn, preferred_element_type=jnp.float32)
    h1 = jnp.maximum(h1 + b1_ref[...], 0.0).astype(jnp.bfloat16)

    # Layer 2: [h2, h1] @ [h1, tb] -> [h2, tb], ReLU.
    w2 = w2_ref[...].astype(jnp.bfloat16)
    h2 = jnp.dot(w2, h1, preferred_element_type=jnp.float32) + b2_ref[...]
    h2 = jnp.maximum(h2, 0.0).astype(jnp.bfloat16)

    # Output layer (identity activation): [1, h2] @ [h2, tb] -> lane-dense [1, tb].
    w3 = w3_ref[...].astype(jnp.bfloat16)
    q = jnp.dot(w3, h2, preferred_element_type=jnp.float32) + b3_ref[0]
    out_ref[...] = q.astype(out_ref.dtype)


_MAX_TILE = 2048


def _num_tensorcores():
    """Best-effort TensorCore count of the local chip (v7x has 2, v5e/v6e have 1)."""
    try:
        dev = jax.devices()[0]
        kind = (getattr(dev, "device_kind", "") or "").lower()
        if "v7" in kind:
            return 2
        nc = getattr(dev, "num_cores", None)
        if nc:
            return int(nc)
    except Exception:
        pass
    return 1


def _pick_batch_tile(batch, num_tc):
    # v7x (2 TCs): exactly two even tiles so "parallel" grid sharding uses both cores.
    if num_tc >= 2 and batch % 2 == 0:
        half = batch // 2
        if half % 128 == 0 and half <= _MAX_TILE:
            return half
    # Single-TC chips (v5e/v6e): the grid is a serial loop -> fewest steps wins.
    if batch <= _MAX_TILE:
        return batch
    for tb in (2048, 1024, 512, 256, 128):
        if batch % tb == 0:
            return tb
    return batch


def mlp_q_forward(obs, act, params, *, batch_tile=None):
    """Q(obs, act) with a fused Pallas TPU kernel.

    obs:    [B, obs_dim] f32
    act:    [B, act_dim] f32
    params: w1 [h1, obs_dim+act_dim], b1 [h1], w2 [h2, h1], b2 [h2], w3 [1, h2], b3 [1]
            (PyTorch nn.Linear layout: weight = [out_features, in_features])
    returns [B] f32
    """
    B, obs_dim = obs.shape
    B2, act_dim = act.shape
    assert B2 == B
    in_dim = obs_dim + act_dim
    h1 = params["w1"].shape[0]
    h2 = params["w2"].shape[0]
    assert params["w1"].shape == (h1, in_dim)
    assert params["w2"].shape == (h2, h1)
    assert params["w3"].shape == (1, h2)

    tb = batch_tile if batch_tile is not None else _pick_batch_tile(B, _num_tensorcores())
    if tb != B:
        assert B % tb == 0, "batch must be divisible by batch_tile"
        assert tb % 128 == 0, "batch tile must be a multiple of 128 (lane axis)"
    grid = (B // tb,)

    # Split w1 along the feature axis (tiny weight slices) so obs/act feed the
    # kernel directly -- the concat/transpose/cast is fused into the kernel.
    w1o = params["w1"][:, :obs_dim]
    w1a = params["w1"][:, obs_dim:]
    b1 = params["b1"].reshape(h1, 1).astype(jnp.float32)
    b2 = params["b2"].reshape(h2, 1).astype(jnp.float32)
    b3 = params["b3"].reshape(1).astype(jnp.float32)

    flops = 2 * B * (in_dim * h1 + h1 * h2 + h2)
    bytes_accessed = ((obs.size + act.size) * 4
                      + (w1o.size + w1a.size + params["w2"].size + params["w3"].size) * 4
                      + (b1.size + b2.size + b3.size) * 4
                      + B * 4)
    cost = pl.CostEstimate(flops=flops, transcendentals=0,
                           bytes_accessed=bytes_accessed)

    # VMEM footprint is tiny; keep the limit small so XLA retains headroom for
    # neighboring fusions, but scale it up if a very large tile is requested.
    per_tile_in = tb * in_dim * 4 * 2                       # double-buffered obs/act
    per_tile_inter = tb * (h1 + h2) * 6 + tb * 4 * 2        # f32+bf16 intermediates, out
    vmem_limit = max(4 * 1024 * 1024, 4 * (per_tile_in + per_tile_inter))

    grid_spec = pltpu.PrefetchScalarGridSpec(
        num_scalar_prefetch=0,
        grid=grid,
        in_specs=[
            # Streamed per batch tile (double-buffered by the pipeline).
            pl.BlockSpec((tb, obs_dim), lambda i: (i, 0)),
            pl.BlockSpec((tb, act_dim), lambda i: (i, 0)),
            # Weights/biases: constant index maps -> resident, no re-fetch.
            pl.BlockSpec((h1, obs_dim), lambda i: (0, 0)),
            pl.BlockSpec((h1, act_dim), lambda i: (0, 0)),
            pl.BlockSpec((h1, 1), lambda i: (0, 0)),
            pl.BlockSpec((h2, h1), lambda i: (0, 0)),
            pl.BlockSpec((h2, 1), lambda i: (0, 0)),
            pl.BlockSpec((1, h2), lambda i: (0, 0)),
            # b3: scalar in SMEM (avoids a padded VMEM tile).
            pl.BlockSpec(memory_space=pltpu.MemorySpace.SMEM),
        ],
        # Lane-dense q output: one [1, tb] row per grid step of a [1, B] slab.
        out_specs=pl.BlockSpec((1, tb), lambda i: (0, i)),
    )

    q = pl.pallas_call(
        _q_kernel,
        out_shape=jax.ShapeDtypeStruct((1, B), jnp.float32),
        grid_spec=grid_spec,
        compiler_params=pltpu.CompilerParams(
            dimension_semantics=("parallel",),
            vmem_limit_bytes=int(vmem_limit)),
        cost_estimate=cost,
    )(obs, act, w1o, w1a, b1, params["w2"], b2, params["w3"], b3)

    return q.reshape(B)  # torch.squeeze(q, -1)


def init_params(key, in_dim, hidden_sizes, out_dim=1):
    """Deterministic synthetic init (uniform, PyTorch-Linear-style fan-in bound)."""
    sizes = [in_dim] + list(hidden_sizes) + [out_dim]
    params = {}
    for i in range(len(sizes) - 1):
        key, kw, kb = jax.random.split(key, 3)
        bound = 1.0 / float(sizes[i]) ** 0.5
        params[f"w{i+1}"] = jax.random.uniform(
            kw, (sizes[i + 1], sizes[i]), jnp.float32, -bound, bound)
        params[f"b{i+1}"] = jax.random.uniform(
            kb, (sizes[i + 1],), jnp.float32, -bound, bound)
    return params


def reference_forward(obs, act, params):
    """Pure-JAX reference with the same bf16-operand / f32-accumulate recipe."""
    x = jnp.concatenate([obs, act], axis=-1).astype(jnp.bfloat16)
    w1 = params["w1"].astype(jnp.bfloat16)
    w2 = params["w2"].astype(jnp.bfloat16)
    w3 = params["w3"].astype(jnp.bfloat16)
    h1 = jnp.maximum(
        jnp.dot(x, w1.T, preferred_element_type=jnp.float32) + params["b1"], 0.0
    ).astype(jnp.bfloat16)
    h2 = jnp.maximum(
        jnp.dot(h1, w2.T, preferred_element_type=jnp.float32) + params["b2"], 0.0
    ).astype(jnp.bfloat16)
    q = jnp.dot(h2, w3.T, preferred_element_type=jnp.float32) + params["b3"]
    return q.reshape(-1)


if __name__ == "__main__":
    # Small shapes consistent with the module: obs_dim=16, act_dim=4, hidden=(64,64).
    batch, obs_dim, act_dim, hidden_sizes = 256, 16, 4, (64, 64)

    key = jax.random.PRNGKey(0)
    key, k_obs, k_act = jax.random.split(key, 3)
    obs = jax.random.normal(k_obs, (batch, obs_dim), jnp.float32)
    act = jax.random.normal(k_act, (batch, act_dim), jnp.float32)
    params = init_params(key, obs_dim + act_dim, hidden_sizes)

    ref = reference_forward(obs, act, params)

    # Auto tile (generation-aware: grid of 1 on v5e/v6e, 2 even tiles on v7x).
    q = jax.block_until_ready(mlp_q_forward(obs, act, params))
    assert q.shape == (batch,)
    assert jnp.allclose(q, ref, atol=2e-3, rtol=2e-3), "mismatch vs reference (auto tile)"

    # Explicitly tiled path (exercises the multi-step grid / double-buffering).
    q2 = jax.block_until_ready(mlp_q_forward(obs, act, params, batch_tile=128))
    assert jnp.allclose(q2, ref, atol=2e-3, rtol=2e-3), "mismatch vs reference (tb=128)"

    print("KERNEL_OK")
</pallas_src>

<mosaic_0001>
module attributes {stable_mosaic.version = 11 : i64} {
  func.func @_q_kernel(%arg0: i32, %arg1: memref<256x16xf32, #tpu.memory_space<vmem>>, %arg2: memref<256x4xf32, #tpu.memory_space<vmem>>, %arg3: memref<64x16xf32, #tpu.memory_space<vmem>>, %arg4: memref<64x4xf32, #tpu.memory_space<vmem>>, %arg5: memref<64x1xf32, #tpu.memory_space<vmem>>, %arg6: memref<64x64xf32, #tpu.memory_space<vmem>>, %arg7: memref<64x1xf32, #tpu.memory_space<vmem>>, %arg8: memref<1x64xf32, #tpu.memory_space<vmem>>, %arg9: memref<1xf32, #tpu.memory_space<smem>>, %arg10: memref<1x256xf32, #tpu.memory_space<vmem>>) attributes {dimension_semantics = [#tpu.dimension_semantics<parallel>], iteration_bounds = array<i64: 1>, scalar_prefetch = 0 : i64, scratch_operands = 0 : i64, tpu.core_type = #tpu.core_type<tc>, window_params = [{transform_indices = @transform_0, window_bounds = array<i64: 256, 16>}, {transform_indices = @transform_1, window_bounds = array<i64: 256, 4>}, {pipeline_mode = #tpu.pipeline_mode<synchronous>, transform_indices = @transform_2, window_bounds = array<i64: 64, 16>}, {pipeline_mode = #tpu.pipeline_mode<synchronous>, transform_indices = @transform_3, window_bounds = array<i64: 64, 4>}, {pipeline_mode = #tpu.pipeline_mode<synchronous>, transform_indices = @transform_4, window_bounds = array<i64: 64, 1>}, {pipeline_mode = #tpu.pipeline_mode<synchronous>, transform_indices = @transform_5, window_bounds = array<i64: 64, 64>}, {pipeline_mode = #tpu.pipeline_mode<synchronous>, transform_indices = @transform_6, window_bounds = array<i64: 64, 1>}, {pipeline_mode = #tpu.pipeline_mode<synchronous>, transform_indices = @transform_7, window_bounds = array<i64: 1, 64>}, {transform_indices = @transform_8, window_bounds = array<i64: 1>}, {transform_indices = @transform_9, window_bounds = array<i64: 1, 256>}]} {
    %c0 = arith.constant 0 : index
    %c0_0 = arith.constant 0 : index
    %0 = vector.load %arg1[%c0, %c0_0] : memref<256x16xf32, #tpu.memory_space<vmem>>, vector<256x16xf32>
    %1 = arith.truncf %0 : vector<256x16xf32> to vector<256x16xbf16>
    %c0_1 = arith.constant 0 : index
    %c0_2 = arith.constant 0 : index
    %2 = vector.load %arg2[%c0_1, %c0_2] : memref<256x4xf32, #tpu.memory_space<vmem>>, vector<256x4xf32>
    %3 = arith.truncf %2 : vector<256x4xf32> to vector<256x4xbf16>
    %c0_3 = arith.constant 0 : index
    %c0_4 = arith.constant 0 : index
    %4 = vector.load %arg3[%c0_3, %c0_4] : memref<64x16xf32, #tpu.memory_space<vmem>>, vector<64x16xf32>
    %5 = arith.truncf %4 : vector<64x16xf32> to vector<64x16xbf16>
    %c0_5 = arith.constant 0 : index
    %c0_6 = arith.constant 0 : index
    %6 = vector.load %arg4[%c0_5, %c0_6] : memref<64x4xf32, #tpu.memory_space<vmem>>, vector<64x4xf32>
    %7 = arith.truncf %6 : vector<64x4xf32> to vector<64x4xbf16>
    %cst = arith.constant dense<0.000000e+00> : vector<64x256xf32>
    %8 = tpu.matmul %5, %1, %cst {dimension_numbers = #tpu.dot_dimension_numbers<[1], [1], [0], [0], [0, 0, 1, 0], [], []>} : vector<64x16xbf16>, vector<256x16xbf16>, vector<64x256xf32> -> vector<64x256xf32>
    %cst_7 = arith.constant dense<0.000000e+00> : vector<64x256xf32>
    %9 = tpu.matmul %7, %3, %cst_7 {dimension_numbers = #tpu.dot_dimension_numbers<[1], [1], [0], [0], [0, 0, 1, 0], [], []>} : vector<64x4xbf16>, vector<256x4xbf16>, vector<64x256xf32> -> vector<64x256xf32>
    %10 = arith.addf %8, %9 : vector<64x256xf32>
    %c0_8 = arith.constant 0 : index
    %c0_9 = arith.constant 0 : index
    %11 = vector.load %arg5[%c0_8, %c0_9] : memref<64x1xf32, #tpu.memory_space<vmem>>, vector<64x1xf32>
    %12 = vector.broadcast %11 : vector<64x1xf32> to vector<64x256xf32>
    %13 = arith.addf %10, %12 : vector<64x256xf32>
    %cst_10 = arith.constant 0.000000e+00 : f32
    %14 = vector.broadcast %cst_10 : f32 to vector<64x256xf32>
    %15 = arith.maximumf %13, %14 : vector<64x256xf32>
    %16 = arith.truncf %15 : vector<64x256xf32> to vector<64x256xbf16>
    %c0_11 = arith.constant 0 : index
    %c0_12 = arith.constant 0 : index
    %17 = vector.load %arg6[%c0_11, %c0_12] : memref<64x64xf32, #tpu.memory_space<vmem>>, vector<64x64xf32>
    %18 = arith.truncf %17 : vector<64x64xf32> to vector<64x64xbf16>
    %cst_13 = arith.constant dense<0.000000e+00> : vector<64x256xf32>
    %19 = tpu.matmul %18, %16, %cst_13 {dimension_numbers = #tpu.dot_dimension_numbers<[1], [0], [0], [1], [0, 0, 1, 1], [], []>} : vector<64x64xbf16>, vector<64x256xbf16>, vector<64x256xf32> -> vector<64x256xf32>
    %c0_14 = arith.constant 0 : index
    %c0_15 = arith.constant 0 : index
    %20 = vector.load %arg7[%c0_14, %c0_15] : memref<64x1xf32, #tpu.memory_space<vmem>>, vector<64x1xf32>
    %21 = vector.broadcast %20 : vector<64x1xf32> to vector<64x256xf32>
    %22 = arith.addf %19, %21 : vector<64x256xf32>
    %cst_16 = arith.constant 0.000000e+00 : f32
    %23 = vector.broadcast %cst_16 : f32 to vector<64x256xf32>
    %24 = arith.maximumf %22, %23 : vector<64x256xf32>
    %25 = arith.truncf %24 : vector<64x256xf32> to vector<64x256xbf16>
    %c0_17 = arith.constant 0 : index
    %c0_18 = arith.constant 0 : index
    %26 = vector.load %arg8[%c0_17, %c0_18] : memref<1x64xf32, #tpu.memory_space<vmem>>, vector<1x64xf32>
    %27 = arith.truncf %26 : vector<1x64xf32> to vector<1x64xbf16>
    %cst_19 = arith.constant dense<0.000000e+00> : vector<1x256xf32>
    %28 = tpu.matmul %27, %25, %cst_19 {dimension_numbers = #tpu.dot_dimension_numbers<[1], [0], [0], [1], [0, 0, 1, 1], [], []>} : vector<1x64xbf16>, vector<64x256xbf16>, vector<1x256xf32> -> vector<1x256xf32>
    %c0_20 = arith.constant 0 : index
    %29 = memref.load %arg9[%c0_20] : memref<1xf32, #tpu.memory_space<smem>>
    %30 = vector.broadcast %29 : f32 to vector<1x256xf32>
    %31 = arith.addf %28, %30 : vector<1x256xf32>
    %c0_21 = arith.constant 0 : index
    %c0_22 = arith.constant 0 : index
    %32 = vector.load %arg10[%c0_21, %c0_22] : memref<1x256xf32, #tpu.memory_space<vmem>>, vector<1x256xf32>
    tpu.vector_store %arg10[%c0_21, %c0_22], %31 {strides = array<i32>} : memref<1x256xf32, #tpu.memory_space<vmem>>, vector<1x256xf32>,
    return
  }
  func.func @transform_0(%arg0: i32) -> (i32, i32) {
    %c0_i32 = arith.constant 0 : i32
    %c0_i32_0 = arith.constant 0 : i32
    return %arg0, %c0_i32 : i32, i32
  }
  func.func @transform_1(%arg0: i32) -> (i32, i32) {
    %c0_i32 = arith.constant 0 : i32
    %c0_i32_0 = arith.constant 0 : i32
    return %arg0, %c0_i32 : i32, i32
  }
  func.func @transform_2(%arg0: i32) -> (i32, i32) {
    %c0_i32 = arith.constant 0 : i32
    %c0_i32_0 = arith.constant 0 : i32
    %c0_i32_1 = arith.constant 0 : i32
    return %c0_i32, %c0_i32_0 : i32, i32
  }
  func.func @transform_3(%arg0: i32) -> (i32, i32) {
    %c0_i32 = arith.constant 0 : i32
    %c0_i32_0 = arith.constant 0 : i32
    %c0_i32_1 = arith.constant 0 : i32
    return %c0_i32, %c0_i32_0 : i32, i32
  }
  func.func @transform_4(%arg0: i32) -> (i32, i32) {
    %c0_i32 = arith.constant 0 : i32
    %c0_i32_0 = arith.constant 0 : i32
    %c0_i32_1 = arith.constant 0 : i32
    return %c0_i32, %c0_i32_0 : i32, i32
  }
  func.func @transform_5(%arg0: i32) -> (i32, i32) {
    %c0_i32 = arith.constant 0 : i32
    %c0_i32_0 = arith.constant 0 : i32
    %c0_i32_1 = arith.constant 0 : i32
    return %c0_i32, %c0_i32_0 : i32, i32
  }
  func.func @transform_6(%arg0: i32) -> (i32, i32) {
    %c0_i32 = arith.constant 0 : i32
    %c0_i32_0 = arith.constant 0 : i32
    %c0_i32_1 = arith.constant 0 : i32
    return %c0_i32, %c0_i32_0 : i32, i32
  }
  func.func @transform_7(%arg0: i32) -> (i32, i32) {
    %c0_i32 = arith.constant 0 : i32
    %c0_i32_0 = arith.constant 0 : i32
    %c0_i32_1 = arith.constant 0 : i32
    return %c0_i32, %c0_i32_0 : i32, i32
  }
  func.func @transform_8(%arg0: i32) -> i32 {
    %c0_i32 = arith.constant 0 : i32
    %c0_i32_0 = arith.constant 0 : i32
    return %c0_i32 : i32
  }
  func.func @transform_9(%arg0: i32) -> (i32, i32) {
    %c0_i32 = arith.constant 0 : i32
    %c0_i32_0 = arith.constant 0 : i32
    return %c0_i32, %arg0 : i32, i32
  }
}

</mosaic_0001>

<llo_original>
// kernel: tpu_custom_call.1
$region0: #{tpu_custom_call.1}
  #allocation0 [shape = 'u32[]', space=smem, size = 0x4, offset = 0x4, fixed_abs, tag = 'smem constant byte address 0x4 - core index']
  #allocation1 [shape = 'u32[144,128]{1,0:T(1,128)}', space=vmem, size = 0x12000, scoped, tag = 'internal scratch']
  #allocation2 [shape = 'f32[1]{0:T(128)S(6)}', space=smem, size = 0x200, scoped, tag = 'scoped memory for tpu_custom_call.1']
  %s0 = inlined_call_operand.vmem [shape: f32[256,16], index: 0, kind: input, shape index: {}]
  %s1 = inlined_call_operand.vmem [shape: f32[256,4], index: 1, kind: input, shape index: {}]
  %s2 = inlined_call_operand.vmem [shape: f32[64,16], index: 2, kind: input, shape index: {}]
  %s3 = inlined_call_operand.vmem [shape: f32[64,4], index: 3, kind: input, shape index: {}]
  %s4 = inlined_call_operand.vmem [shape: f32[64,1], index: 4, kind: input, shape index: {}]
  %s5 = inlined_call_operand.vmem [shape: f32[64,64], index: 5, kind: input, shape index: {}]
  %s6 = inlined_call_operand.vmem [shape: f32[64,1], index: 6, kind: input, shape index: {}]
  %s7 = inlined_call_operand.vmem [shape: f32[1,64], index: 7, kind: input, shape index: {}]
  %s8 = inlined_call_operand.<no memory space> [shape: f32[1], index: 8, kind: input, shape index: {}]
  %s9 = inlined_call_operand.hbm [shape: f32[1,256], index: 9, kind: output, shape index: {}]
  %s10 = sld [smem:[#allocation0]]
  $region46: #{tpu_custom_call.1} parent=0
    _
  %s12 = ssub.s32 1, %s10
  %s13 = scalar_select 0, %s12, %s10
  %14 = sst [smem:[#allocation2]] %s8
  $region1: #{tpu_custom_call.1} parent=0
    #allocation3 [shape = 'u8[1024]{0}', space=vmem, size = 0x400, scoped, tag = 'output window, operand 0, single buffered']
    #allocation4 [shape = 's32[1]{0}', space=sflag, size = 0x4, scoped, tag = 'scoped memory for tpu_custom_call.1']
    %15 = vsyncpa [#allocation4], 0
    // Predicated region
    $region2: #{tpu_custom_call.1} parent=1 // pred_check
      _
    $region3: #{tpu_custom_call.1} parent=1 // pred_check_branch
      %17 = sbr.rel (0) target = $region5
    $region4: #{tpu_custom_call.1} parent=1 // pred_region
      _
    $region5: #{tpu_custom_call.1} parent=1 // pred_fallthru
      _
    // Predicated region
    $region6: #{tpu_custom_call.1} parent=1 // pred_check
      _
    $region7: #{tpu_custom_call.1} parent=1 // pred_check_branch
      %19 = sbr.rel (0) target = $region9
    $region8: #{tpu_custom_call.1} parent=1 // pred_region
      _
    $region9: #{tpu_custom_call.1} parent=1 // pred_fallthru
      _
    // Predicated region
    $region10: #{tpu_custom_call.1} parent=1 // pred_check
      _
    $region11: #{tpu_custom_call.1} parent=1 // pred_check_branch
      %21 = sbr.rel (0) target = $region13
    $region12: #{tpu_custom_call.1} parent=1 // pred_region
      _
    $region13: #{tpu_custom_call.1} parent=1 // pred_fallthru
      _
    // Predicated region
    $region14: #{tpu_custom_call.1} parent=1 // pred_check
      _
    $region15: #{tpu_custom_call.1} parent=1 // pred_check_branch
      %23 = sbr.rel (0) target = $region17
    $region16: #{tpu_custom_call.1} parent=1 // pred_region
      _
    $region17: #{tpu_custom_call.1} parent=1 // pred_fallthru
      _
    // Predicated region
    $region18: #{tpu_custom_call.1} parent=1 // pred_check
      _
    $region19: #{tpu_custom_call.1} parent=1 // pred_check_branch
      %25 = sbr.rel (0) target = $region21
    $region20: #{tpu_custom_call.1} parent=1 // pred_region
      _
    $region21: #{tpu_custom_call.1} parent=1 // pred_fallthru
      _
    // Predicated region
    $region22: #{tpu_custom_call.1} parent=1 // pred_check
      _
    $region23: #{tpu_custom_call.1} parent=1 // pred_check_branch
      %27 = sbr.rel (0) target = $region25
    $region24: #{tpu_custom_call.1} parent=1 // pred_region
      _
    $region25: #{tpu_custom_call.1} parent=1 // pred_fallthru
      _
    // Predicated region
    $region26: #{tpu_custom_call.1} parent=1 // pred_check
      _
    $region27: #{tpu_custom_call.1} parent=1 // pred_check_branch
      %29 = sbr.rel (0) target = $region29
    $region28: #{tpu_custom_call.1} parent=1 // pred_region
      _
    $region29: #{tpu_custom_call.1} parent=1 // pred_fallthru
      _
    // Predicated region
    $region30: #{tpu_custom_call.1} parent=1 // pred_check
      _
    $region31: #{tpu_custom_call.1} parent=1 // pred_check_branch
      %31 = sbr.rel (0) target = $region33
    $region32: #{tpu_custom_call.1} parent=1 // pred_region
      _
    $region33: #{tpu_custom_call.1} parent=1 // pred_fallthru
      _
    // Predicated region
    $region34: #{tpu_custom_call.1} parent=1 // pred_check
      _
    $region35: #{tpu_custom_call.1} parent=1 // pred_check_branch
      %33 = sbr.rel (0) target = $region37
    $region36: #{tpu_custom_call.1} parent=1 // pred_region
      _
    $region37: #{tpu_custom_call.1} parent=1 // pred_fallthru
      _
    %v35 = vld [vmem:[%s0] sm:$0xff]
    %v36 = vld [vmem:[%s0 + $0x8] sm:$0xff]
    %v37 = vld [vmem:[%s0 + $0x10] sm:$0xff]
    %v38 = vld [vmem:[%s0 + $0x18] sm:$0xff]
    %v39 = vld [vmem:[%s0 + $0x20] sm:$0xff]
    %v40 = vld [vmem:[%s0 + $0x28] sm:$0xff]
    %v41 = vld [vmem:[%s0 + $0x30] sm:$0xff]
    %v42 = vld [vmem:[%s0 + $0x38] sm:$0xff]
    %v43 = vld [vmem:[%s0 + $0x40] sm:$0xff]
    %v44 = vld [vmem:[%s0 + $0x48] sm:$0xff]
    %v45 = vld [vmem:[%s0 + $0x50] sm:$0xff]
    %v46 = vld [vmem:[%s0 + $0x58] sm:$0xff]
    %v47 = vld [vmem:[%s0 + $0x60] sm:$0xff]
    %v48 = vld [vmem:[%s0 + $0x68] sm:$0xff]
    %v49 = vld [vmem:[%s0 + $0x70] sm:$0xff]
    %v50 = vld [vmem:[%s0 + $0x78] sm:$0xff]
    %v51 = vld [vmem:[%s0 + $0x80] sm:$0xff]
    %v52 = vld [vmem:[%s0 + $0x88] sm:$0xff]
    %v53 = vld [vmem:[%s0 + $0x90] sm:$0xff]
    %v54 = vld [vmem:[%s0 + $0x98] sm:$0xff]
    %v55 = vld [vmem:[%s0 + $0xa0] sm:$0xff]
    %v56 = vld [vmem:[%s0 + $0xa8] sm:$0xff]
    %v57 = vld [vmem:[%s0 + $0xb0] sm:$0xff]
    %v58 = vld [vmem:[%s0 + $0xb8] sm:$0xff]
    %v59 = vld [vmem:[%s0 + $0xc0] sm:$0xff]
    %v60 = vld [vmem:[%s0 + $0xc8] sm:$0xff]
    %v61 = vld [vmem:[%s0 + $0xd0] sm:$0xff]
    %v62 = vld [vmem:[%s0 + $0xd8] sm:$0xff]
    %v63 = vld [vmem:[%s0 + $0xe0] sm:$0xff]
    %v64 = vld [vmem:[%s0 + $0xe8] sm:$0xff]
    %v65 = vld [vmem:[%s0 + $0xf0] sm:$0xff]
    %v66 = vld [vmem:[%s0 + $0xf8] sm:$0xff]
    %v67 = vpack.c.bf16 %v36, %v35
    %v68 = vpack.c.bf16 %v38, %v37
    %v69 = vpack.c.bf16 %v40, %v39
    %v70 = vpack.c.bf16 %v42, %v41
    %v71 = vpack.c.bf16 %v44, %v43
    %v72 = vpack.c.bf16 %v46, %v45
    %v73 = vpack.c.bf16 %v48, %v47
    %v74 = vpack.c.bf16 %v50, %v49
    %v75 = vpack.c.bf16 %v52, %v51
    %v76 = vpack.c.bf16 %v54, %v53
    %v77 = vpack.c.bf16 %v56, %v55
    %v78 = vpack.c.bf16 %v58, %v57
    %v79 = vpack.c.bf16 %v60, %v59
    %v80 = vpack.c.bf16 %v62, %v61
    %v81 = vpack.c.bf16 %v64, %v63
    %v82 = vpack.c.bf16 %v66, %v65
    %v83 = vld [vmem:[%s1] sm:$0xff]
    %v84 = vld [vmem:[%s1 + $0x8] sm:$0xff]
    %v85 = vld [vmem:[%s1 + $0x10] sm:$0xff]
    %v86 = vld [vmem:[%s1 + $0x18] sm:$0xff]
    %v87 = vld [vmem:[%s1 + $0x20] sm:$0xff]
    %v88 = vld [vmem:[%s1 + $0x28] sm:$0xff]
    %v89 = vld [vmem:[%s1 + $0x30] sm:$0xff]
    %v90 = vld [vmem:[%s1 + $0x38] sm:$0xff]
    %v91 = vld [vmem:[%s1 + $0x40] sm:$0xff]
    %v92 = vld [vmem:[%s1 + $0x48] sm:$0xff]
    %v93 = vld [vmem:[%s1 + $0x50] sm:$0xff]
    %v94 = vld [vmem:[%s1 + $0x58] sm:$0xff]
    %v95 = vld [vmem:[%s1 + $0x60] sm:$0xff]
    %v96 = vld [vmem:[%s1 + $0x68] sm:$0xff]
    %v97 = vld [vmem:[%s1 + $0x70] sm:$0xff]
    %v98 = vld [vmem:[%s1 + $0x78] sm:$0xff]
    %v99 = vld [vmem:[%s1 + $0x80] sm:$0xff]
    %v100 = vld [vmem:[%s1 + $0x88] sm:$0xff]
    %v101 = vld [vmem:[%s1 + $0x90] sm:$0xff]
    %v102 = vld [vmem:[%s1 + $0x98] sm:$0xff]
    %v103 = vld [vmem:[%s1 + $0xa0] sm:$0xff]
    %v104 = vld [vmem:[%s1 + $0xa8] sm:$0xff]
    %v105 = vld [vmem:[%s1 + $0xb0] sm:$0xff]
    %v106 = vld [vmem:[%s1 + $0xb8] sm:$0xff]
    %v107 = vld [vmem:[%s1 + $0xc0] sm:$0xff]
    %v108 = vld [vmem:[%s1 + $0xc8] sm:$0xff]
    %v109 = vld [vmem:[%s1 + $0xd0] sm:$0xff]
    %v110 = vld [vmem:[%s1 + $0xd8] sm:$0xff]
    %v111 = vld [vmem:[%s1 + $0xe0] sm:$0xff]
    %v112 = vld [vmem:[%s1 + $0xe8] sm:$0xff]
    %v113 = vld [vmem:[%s1 + $0xf0] sm:$0xff]
    %v114 = vld [vmem:[%s1 + $0xf8] sm:$0xff]
    %v115 = vpack.c.bf16 %v84, %v83
    %v116 = vpack.c.bf16 %v86, %v85
    %v117 = vpack.c.bf16 %v88, %v87
    %v118 = vpack.c.bf16 %v90, %v89
    %v119 = vpack.c.bf16 %v92, %v91
    %v120 = vpack.c.bf16 %v94, %v93
    %v121 = vpack.c.bf16 %v96, %v95
    %v122 = vpack.c.bf16 %v98, %v97
    %v123 = vpack.c.bf16 %v100, %v99
    %v124 = vpack.c.bf16 %v102, %v101
    %v125 = vpack.c.bf16 %v104, %v103
    %v126 = vpack.c.bf16 %v106, %v105
    %v127 = vpack.c.bf16 %v108, %v107
    %v128 = vpack.c.bf16 %v110, %v109
    %v129 = vpack.c.bf16 %v112, %v111
    %v130 = vpack.c.bf16 %v114, %v113
    %v131 = vld [vmem:[%s2] sm:$0xff]
    %v132 = vld [vmem:[%s2 + $0x8] sm:$0xff]
    %v133 = vld [vmem:[%s2 + $0x10] sm:$0xff]
    %v134 = vld [vmem:[%s2 + $0x18] sm:$0xff]
    %v135 = vld [vmem:[%s2 + $0x20] sm:$0xff]
    %v136 = vld [vmem:[%s2 + $0x28] sm:$0xff]
    %v137 = vld [vmem:[%s2 + $0x30] sm:$0xff]
    %v138 = vld [vmem:[%s2 + $0x38] sm:$0xff]
    %v139 = vpack.c.bf16 %v132, %v131
    %v140 = vpack.c.bf16 %v134, %v133
    %v141 = vpack.c.bf16 %v136, %v135
    %v142 = vpack.c.bf16 %v138, %v137
    %v143 = vld [vmem:[%s3] sm:$0xff]
    %v144 = vld [vmem:[%s3 + $0x8] sm:$0xff]
    %v145 = vld [vmem:[%s3 + $0x10] sm:$0xff]
    %v146 = vld [vmem:[%s3 + $0x18] sm:$0xff]
    %v147 = vld [vmem:[%s3 + $0x20] sm:$0xff]
    %v148 = vld [vmem:[%s3 + $0x28] sm:$0xff]
    %v149 = vld [vmem:[%s3 + $0x30] sm:$0xff]
    %v150 = vld [vmem:[%s3 + $0x38] sm:$0xff]
    %v151 = vpack.c.bf16 %v144, %v143
    %v152 = vpack.c.bf16 %v146, %v145
    %v153 = vpack.c.bf16 %v148, %v147
    %v154 = vpack.c.bf16 %v150, %v149
    %vm155 = vcmask 31744
    %v157 = vsel %vm155, %v151, 0
    %v160 = vsel %vm155, %v152, 0
    %v163 = vsel %vm155, %v153, 0
    %v166 = vsel %vm155, %v154, 0
    %v169 = vsel %vm155, %v115, 0
    %v172 = vsel %vm155, %v116, 0
    %v175 = vsel %vm155, %v117, 0
    %v178 = vsel %vm155, %v118, 0
    %v181 = vsel %vm155, %v119, 0
    %v184 = vsel %vm155, %v120, 0
    %v187 = vsel %vm155, %v121, 0
    %v190 = vsel %vm155, %v122, 0
    %v193 = vsel %vm155, %v123, 0
    %v196 = vsel %vm155, %v124, 0
    %v199 = vsel %vm155, %v125, 0
    %v202 = vsel %vm155, %v126, 0
    %v205 = vsel %vm155, %v127, 0
    %v208 = vsel %vm155, %v128, 0
    %v211 = vsel %vm155, %v129, 0
    %v214 = vsel %vm155, %v130, 0
    %216 = vmatprep.subr.bf16.mxu0 0
    %217 = vmatpush1.bf16.xpose.msra.mxu0 %v169
    %218 = vmatprep.subr.bf16.mxu0 0
    %219 = vmatpush1.bf16.xpose.msra.mxu0 %v172
    %220 = vmatprep.subr.bf16.mxu0 0
    %221 = vmatpush1.bf16.xpose.msra.mxu0 %v175
    %222 = vmatprep.subr.bf16.mxu0 0
    %223 = vmatpush1.bf16.xpose.msra.mxu0 %v178
    %224 = vmatprep.subr.bf16.mxu0 0
    %225 = vmatpush1.bf16.xpose.msra.mxu0 %v181
    %226 = vmatprep.subr.bf16.mxu0 0
    %227 = vmatpush1.bf16.xpose.msra.mxu0 %v184
    %228 = vmatprep.subr.bf16.mxu0 0
    %229 = vmatpush1.bf16.xpose.msra.mxu0 %v187
    %230 = vmatprep.subr.bf16.mxu0 0
    %231 = vmatpush1.bf16.xpose.msra.mxu0 %v190
    %232 = vmatprep.subr.bf16.mxu0 0
    %233 = vmatpush1.bf16.xpose.msra.mxu0 %v193
    %234 = vmatprep.subr.bf16.mxu0 0
    %235 = vmatpush1.bf16.xpose.msra.mxu0 %v196
    %236 = vmatprep.subr.bf16.mxu0 0
    %237 = vmatpush1.bf16.xpose.msra.mxu0 %v199
    %238 = vmatprep.subr.bf16.mxu0 0
    %239 = vmatpush1.bf16.xpose.msra.mxu0 %v202
    %240 = vmatprep.subr.bf16.mxu0 0
    %241 = vmatpush1.bf16.xpose.msra.mxu0 %v205
    %242 = vmatprep.subr.bf16.mxu0 0
    %243 = vmatpush1.bf16.xpose.msra.mxu0 %v208
    %244 = vmatprep.subr.bf16.mxu0 0
    %245 = vmatpush1.bf16.xpose.msra.mxu0 %v211
    %246 = vmatprep.subr.bf16.mxu0 0
    %247 = vmatpush1.bf16.xpose.msra.mxu0 %v214
    %248 = vmatprep.mubr.bf16.mxu0 0
    %249 = vmatmul.mubr.bf16.gmra.mrb[0].mxu0 %v157
    %v250 = vpop.f32.mrb[0].mxu0
    %v251 = vadd.f32 0.0, %v250
    %v252 = vpop.f32.mrb[0].mxu0
    %v253 = vadd.f32 0.0, %v252
    %v254 = vpop.f32.mrb[0].mxu0
    %v255 = vadd.f32 0.0, %v254
    %v256 = vpop.f32.mrb[0].mxu0
    %v257 = vadd.f32 0.0, %v256
    %258 = vmatprep.mubr.bf16.mxu0 0
    %259 = vmatmul.mubr.bf16.gmra.mrb[0].mxu0 %v160
    %v260 = vpop.f32.mrb[0].mxu0
    %v261 = vadd.f32 0.0, %v260
    %v262 = vpop.f32.mrb[0].mxu0
    %v263 = vadd.f32 0.0, %v262
    %v264 = vpop.f32.mrb[0].mxu0
    %v265 = vadd.f32 0.0, %v264
    %v266 = vpop.f32.mrb[0].mxu0
    %v267 = vadd.f32 0.0, %v266
    %268 = vmatprep.mubr.bf16.mxu0 0
    %269 = vmatmul.mubr.bf16.gmra.mrb[0].mxu0 %v163
    %v270 = vpop.f32.mrb[0].mxu0
    %v271 = vadd.f32 0.0, %v270
    %v272 = vpop.f32.mrb[0].mxu0
    %v273 = vadd.f32 0.0, %v272
    %v274 = vpop.f32.mrb[0].mxu0
    %v275 = vadd.f32 0.0, %v274
    %v276 = vpop.f32.mrb[0].mxu0
    %v277 = vadd.f32 0.0, %v276
    %278 = vmatprep.mubr.bf16.mxu0 0
    %279 = vmatmul.mubr.bf16.gmra.mrb[0].mxu0 %v166
    %v280 = vpop.f32.mrb[0].mxu0
    %v281 = vadd.f32 0.0, %v280
    %v282 = vpop.f32.mrb[0].mxu0
    %v283 = vadd.f32 0.0, %v282
    %v284 = vpop.f32.mrb[0].mxu0
    %v285 = vadd.f32 0.0, %v284
    %v286 = vpop.f32.mrb[0].mxu0
    %v287 = vadd.f32 0.0, %v286
    %288 = vdwg.mxu0
    %vm289 = vcmask 130048
    %v291 = vsel %vm289, %v139, 0
    %v294 = vsel %vm289, %v140, 0
    %v297 = vsel %vm289, %v141, 0
    %v300 = vsel %vm289, %v142, 0
    %v303 = vsel %vm289, %v67, 0
    %v306 = vsel %vm289, %v68, 0
    %v309 = vsel %vm289, %v69, 0
    %v312 = vsel %vm289, %v70, 0
    %v315 = vsel %vm289, %v71, 0
    %v318 = vsel %vm289, %v72, 0
    %v321 = vsel %vm289, %v73, 0
    %v324 = vsel %vm289, %v74, 0
    %v327 = vsel %vm289, %v75, 0
    %v330 = vsel %vm289, %v76, 0
    %v333 = vsel %vm289, %v77, 0
    %v336 = vsel %vm289, %v78, 0
    %v339 = vsel %vm289, %v79, 0
    %v342 = vsel %vm289, %v80, 0
    %v345 = vsel %vm289, %v81, 0
    %v348 = vsel %vm289, %v82, 0
    %350 = vmatprep.subr.bf16.mxu0 0
    %351 = vmatpush1.bf16.xpose.msra.mxu0 %v303
    %352 = vmatprep.subr.bf16.mxu0 0
    %353 = vmatpush1.bf16.xpose.msra.mxu0 %v306
    %354 = vmatprep.subr.bf16.mxu0 0
    %355 = vmatpush1.bf16.xpose.msra.mxu0 %v309
    %356 = vmatprep.subr.bf16.mxu0 0
    %357 = vmatpush1.bf16.xpose.msra.mxu0 %v312
    %358 = vmatprep.subr.bf16.mxu0 0
    %359 = vmatpush1.bf16.xpose.msra.mxu0 %v315
    %360 = vmatprep.subr.bf16.mxu0 0
    %361 = vmatpush1.bf16.xpose.msra.mxu0 %v318
    %362 = vmatprep.subr.bf16.mxu0 0
    %363 = vmatpush1.bf16.xpose.msra.mxu0 %v321
    %364 = vmatprep.subr.bf16.mxu0 0
    %365 = vmatpush1.bf16.xpose.msra.mxu0 %v324
    %366 = vmatprep.subr.bf16.mxu0 0
    %367 = vmatpush1.bf16.xpose.msra.mxu0 %v327
    %368 = vmatprep.subr.bf16.mxu0 0
    %369 = vmatpush1.bf16.xpose.msra.mxu0 %v330
    %370 = vmatprep.subr.bf16.mxu0 0
    %371 = vmatpush1.bf16.xpose.msra.mxu0 %v333
    %372 = vmatprep.subr.bf16.mxu0 0
    %373 = vmatpush1.bf16.xpose.msra.mxu0 %v336
    %374 = vmatprep.subr.bf16.mxu0 0
    %375 = vmatpush1.bf16.xpose.msra.mxu0 %v339
    %376 = vmatprep.subr.bf16.mxu0 0
    %377 = vmatpush1.bf16.xpose.msra.mxu0 %v342
    %378 = vmatprep.subr.bf16.mxu0 0
    %379 = vmatpush1.bf16.xpose.msra.mxu0 %v345
    %380 = vmatprep.subr.bf16.mxu0 0
    %381 = vmatpush1.bf16.xpose.msra.mxu0 %v348
    %382 = vmatprep.mubr.bf16.mxu0 0
    %383 = vmatmul.mubr.bf16.gmra.mrb[0].mxu0 %v291
    %v384 = vpop.f32.mrb[0].mxu0
    %v385 = vadd.f32 %v251, %v384
    %v386 = vpop.f32.mrb[0].mxu0
    %v387 = vadd.f32 %v253, %v386
    %v388 = vpop.f32.mrb[0].mxu0
    %v389 = vadd.f32 %v255, %v388
    %v390 = vpop.f32.mrb[0].mxu0
    %v391 = vadd.f32 %v257, %v390
    %392 = vmatprep.mubr.bf16.mxu0 0
    %393 = vmatmul.mubr.bf16.gmra.mrb[0].mxu0 %v294
    %v394 = vpop.f32.mrb[0].mxu0
    %v395 = vadd.f32 %v261, %v394
    %v396 = vpop.f32.mrb[0].mxu0
    %v397 = vadd.f32 %v263, %v396
    %v398 = vpop.f32.mrb[0].mxu0
    %v399 = vadd.f32 %v265, %v398
    %v400 = vpop.f32.mrb[0].mxu0
    %v401 = vadd.f32 %v267, %v400
    %402 = vmatprep.mubr.bf16.mxu0 0
    %403 = vmatmul.mubr.bf16.gmra.mrb[0].mxu0 %v297
    %v404 = vpop.f32.mrb[0].mxu0
    %v405 = vadd.f32 %v271, %v404
    %v406 = vpop.f32.mrb[0].mxu0
    %v407 = vadd.f32 %v273, %v406
    %v408 = vpop.f32.mrb[0].mxu0
    %v409 = vadd.f32 %v275, %v408
    %v410 = vpop.f32.mrb[0].mxu0
    %v411 = vadd.f32 %v277, %v410
    %412 = vmatprep.mubr.bf16.mxu0 0
    %413 = vmatmul.mubr.bf16.gmra.mrb[0].mxu0 %v300
    %v414 = vpop.f32.mrb[0].mxu0
    %v415 = vadd.f32 %v281, %v414
    %v416 = vpop.f32.mrb[0].mxu0
    %v417 = vadd.f32 %v283, %v416
    %v418 = vpop.f32.mrb[0].mxu0
    %v419 = vadd.f32 %v285, %v418
    %v420 = vpop.f32.mrb[0].mxu0
    %v421 = vadd.f32 %v287, %v420
    %422 = vdwg.mxu0
    %v423 = vld [vmem:[%s4] sm:$0xff]
    %v424 = vld [vmem:[%s4 + $0x8] sm:$0xff]
    %v425 = vld [vmem:[%s4 + $0x10] sm:$0xff]
    %v426 = vld [vmem:[%s4 + $0x18] sm:$0xff]
    %v427 = vld [vmem:[%s4 + $0x20] sm:$0xff]
    %v428 = vld [vmem:[%s4 + $0x28] sm:$0xff]
    %v429 = vld [vmem:[%s4 + $0x30] sm:$0xff]
    %v430 = vld [vmem:[%s4 + $0x38] sm:$0xff]
    %432 = vset.pattern.permute.xlu0 0
    %433 = vperm.xlu0 %432, %v423
    %v434 = vpop.permute.xlu0 %433
    %437 = vset.pattern.permute.xlu0 0
    %438 = vperm.xlu0 %437, %v424
    %v439 = vpop.permute.xlu0 %438
    %442 = vset.pattern.permute.xlu0 0
    %443 = vperm.xlu0 %442, %v425
    %v444 = vpop.permute.xlu0 %443
    %447 = vset.pattern.permute.xlu0 0
    %448 = vperm.xlu0 %447, %v426
    %v449 = vpop.permute.xlu0 %448
    %452 = vset.pattern.permute.xlu0 0
    %453 = vperm.xlu0 %452, %v427
    %v454 = vpop.permute.xlu0 %453
    %457 = vset.pattern.permute.xlu0 0
    %458 = vperm.xlu0 %457, %v428
    %v459 = vpop.permute.xlu0 %458
    %462 = vset.pattern.permute.xlu0 0
    %463 = vperm.xlu0 %462, %v429
    %v464 = vpop.permute.xlu0 %463
    %467 = vset.pattern.permute.xlu0 0
    %468 = vperm.xlu0 %467, %v430
    %v469 = vpop.permute.xlu0 %468
    %v471 = vadd.f32 %v385, %v434
    %v472 = vadd.f32 %v387, %v434
    %v473 = vadd.f32 %v389, %v439
    %v474 = vadd.f32 %v391, %v439
    %v475 = vadd.f32 %v395, %v444
    %v476 = vadd.f32 %v397, %v444
    %v477 = vadd.f32 %v399, %v449
    %v478 = vadd.f32 %v401, %v449
    %v479 = vadd.f32 %v405, %v454
    %v480 = vadd.f32 %v407, %v454
    %v481 = vadd.f32 %v409, %v459
    %v482 = vadd.f32 %v411, %v459
    %v483 = vadd.f32 %v415, %v464
    %v484 = vadd.f32 %v417, %v464
    %v485 = vadd.f32 %v419, %v469
    %v486 = vadd.f32 %v421, %v469
    %v487 = vmax.f32 %v471, 0.0
    %v488 = vmax.f32 %v472, 0.0
    %v489 = vmax.f32 %v473, 0.0
    %v490 = vmax.f32 %v474, 0.0
    %v491 = vmax.f32 %v475, 0.0
    %v492 = vmax.f32 %v476, 0.0
    %v493 = vmax.f32 %v477, 0.0
    %v494 = vmax.f32 %v478, 0.0
    %v495 = vmax.f32 %v479, 0.0
    %v496 = vmax.f32 %v480, 0.0
    %v497 = vmax.f32 %v481, 0.0
    %v498 = vmax.f32 %v482, 0.0
    %v499 = vmax.f32 %v483, 0.0
    %v500 = vmax.f32 %v484, 0.0
    %v501 = vmax.f32 %v485, 0.0
    %v502 = vmax.f32 %v486, 0.0
    %v503 = vpack.c.bf16 %v489, %v487
    %v504 = vpack.c.bf16 %v490, %v488
    %v505 = vpack.c.bf16 %v493, %v491
    %v506 = vpack.c.bf16 %v494, %v492
    %v507 = vpack.c.bf16 %v497, %v495
    %v508 = vpack.c.bf16 %v498, %v496
    %v509 = vpack.c.bf16 %v501, %v499
    %v510 = vpack.c.bf16 %v502, %v500
    %v511 = vld [vmem:[%s5] sm:$0xff]
    %v512 = vld [vmem:[%s5 + $0x8] sm:$0xff]
    %v513 = vld [vmem:[%s5 + $0x10] sm:$0xff]
    %v514 = vld [vmem:[%s5 + $0x18] sm:$0xff]
    %v515 = vld [vmem:[%s5 + $0x20] sm:$0xff]
    %v516 = vld [vmem:[%s5 + $0x28] sm:$0xff]
    %v517 = vld [vmem:[%s5 + $0x30] sm:$0xff]
    %v518 = vld [vmem:[%s5 + $0x38] sm:$0xff]
    %v519 = vpack.c.bf16 %v512, %v511
    %v520 = vpack.c.bf16 %v514, %v513
    %v521 = vpack.c.bf16 %v516, %v515
    %v522 = vpack.c.bf16 %v518, %v517
    %v523 = vld [vmem:[%s6] sm:$0xff]
    %v524 = vld [vmem:[%s6 + $0x8] sm:$0xff]
    %v525 = vld [vmem:[%s6 + $0x10] sm:$0xff]
    %v526 = vld [vmem:[%s6 + $0x18] sm:$0xff]
    %v527 = vld [vmem:[%s6 + $0x20] sm:$0xff]
    %v528 = vld [vmem:[%s6 + $0x28] sm:$0xff]
    %v529 = vld [vmem:[%s6 + $0x30] sm:$0xff]
    %v530 = vld [vmem:[%s6 + $0x38] sm:$0xff]
    %532 = vset.pattern.permute.xlu0 0
    %533 = vperm.xlu0 %532, %v523
    %v534 = vpop.permute.xlu0 %533
    %537 = vset.pattern.permute.xlu0 0
    %538 = vperm.xlu0 %537, %v524
    %v539 = vpop.permute.xlu0 %538
    %542 = vset.pattern.permute.xlu0 0
    %543 = vperm.xlu0 %542, %v525
    %v544 = vpop.permute.xlu0 %543
    %547 = vset.pattern.permute.xlu0 0
    %548 = vperm.xlu0 %547, %v526
    %v549 = vpop.permute.xlu0 %548
    %552 = vset.pattern.permute.xlu0 0
    %553 = vperm.xlu0 %552, %v527
    %v554 = vpop.permute.xlu0 %553
    %557 = vset.pattern.permute.xlu0 0
    %558 = vperm.xlu0 %557, %v528
    %v559 = vpop.permute.xlu0 %558
    %562 = vset.pattern.permute.xlu0 0
    %563 = vperm.xlu0 %562, %v529
    %v564 = vpop.permute.xlu0 %563
    %567 = vset.pattern.permute.xlu0 0
    %568 = vperm.xlu0 %567, %v530
    %v569 = vpop.permute.xlu0 %568
    %vm571 = vcmask 523264
    %v573 = vsel %vm571, %v519, 0
    %v576 = vsel %vm571, %v520, 0
    %v579 = vsel %vm571, %v521, 0
    %v582 = vsel %vm571, %v522, 0
    %584 = vmatprep.subr.bf16.mxu0 %v504
    %585 = vmatpush1.bf16.msra.mxu0 %v503
    %586 = vmatprep.subr.bf16.mxu0 %v506
    %587 = vmatpush1.bf16.msra.mxu0 %v505
    %588 = vmatprep.subr.bf16.mxu0 %v508
    %589 = vmatpush1.bf16.msra.mxu0 %v507
    %590 = vmatprep.subr.bf16.mxu0 %v510
    %591 = vmatpush1.bf16.msra.mxu0 %v509
    %592 = vmatprep.subr.bf16.mxu0 0
    %593 = vmatpush1.bf16.msra.mxu0 0
    %594 = vmatprep.subr.bf16.mxu0 0
    %595 = vmatpush1.bf16.msra.mxu0 0
    %596 = vmatprep.subr.bf16.mxu0 0
    %597 = vmatpush1.bf16.msra.mxu0 0
    %598 = vmatprep.subr.bf16.mxu0 0
    %599 = vmatpush1.bf16.msra.mxu0 0
    %600 = vmatprep.subr.bf16.mxu0 0
    %601 = vmatpush1.bf16.msra.mxu0 0
    %602 = vmatprep.subr.bf16.mxu0 0
    %603 = vmatpush1.bf16.msra.mxu0 0
    %604 = vmatprep.subr.bf16.mxu0 0
    %605 = vmatpush1.bf16.msra.mxu0 0
    %606 = vmatprep.subr.bf16.mxu0 0
    %607 = vmatpush1.bf16.msra.mxu0 0
    %608 = vmatprep.subr.bf16.mxu0 0
    %609 = vmatpush1.bf16.msra.mxu0 0
    %610 = vmatprep.subr.bf16.mxu0 0
    %611 = vmatpush1.bf16.msra.mxu0 0
    %612 = vmatprep.subr.bf16.mxu0 0
    %613 = vmatpush1.bf16.msra.mxu0 0
    %614 = vmatprep.subr.bf16.mxu0 0
    %615 = vmatpush1.bf16.msra.mxu0 0
    %616 = vmatprep.mubr.bf16.mxu0 0
    %617 = vmatmul.mubr.bf16.gmra.mrb[0].mxu0 %v573
    %v618 = vpop.f32.mrb[0].mxu0
    %v619 = vadd.f32 %v534, %v618
    %v620 = vpop.f32.mrb[0].mxu0
    %v621 = vadd.f32 %v534, %v620
    %v622 = vpop.f32.mrb[0].mxu0
    %v623 = vadd.f32 %v539, %v622
    %v624 = vpop.f32.mrb[0].mxu0
    %v625 = vadd.f32 %v539, %v624
    %626 = vmatprep.mubr.bf16.mxu0 0
    %627 = vmatmul.mubr.bf16.gmra.mrb[0].mxu0 %v576
    %v628 = vpop.f32.mrb[0].mxu0
    %v629 = vadd.f32 %v544, %v628
    %v630 = vpop.f32.mrb[0].mxu0
    %v631 = vadd.f32 %v544, %v630
    %v632 = vpop.f32.mrb[0].mxu0
    %v633 = vadd.f32 %v549, %v632
    %v634 = vpop.f32.mrb[0].mxu0
    %v635 = vadd.f32 %v549, %v634
    %636 = vmatprep.mubr.bf16.mxu0 0
    %637 = vmatmul.mubr.bf16.gmra.mrb[0].mxu0 %v579
    %v638 = vpop.f32.mrb[0].mxu0
    %v639 = vadd.f32 %v554, %v638
    %v640 = vpop.f32.mrb[0].mxu0
    %v641 = vadd.f32 %v554, %v640
    %v642 = vpop.f32.mrb[0].mxu0
    %v643 = vadd.f32 %v559, %v642
    %v644 = vpop.f32.mrb[0].mxu0
    %v645 = vadd.f32 %v559, %v644
    %646 = vmatprep.mubr.bf16.mxu0 0
    %647 = vmatmul.mubr.bf16.gmra.mrb[0].mxu0 %v582
    %v648 = vpop.f32.mrb[0].mxu0
    %v649 = vadd.f32 %v564, %v648
    %v650 = vpop.f32.mrb[0].mxu0
    %v651 = vadd.f32 %v564, %v650
    %v652 = vpop.f32.mrb[0].mxu0
    %v653 = vadd.f32 %v569, %v652
    %v654 = vpop.f32.mrb[0].mxu0
    %v655 = vadd.f32 %v569, %v654
    %656 = vdwg.mxu0
    %v657 = vmax.f32 %v619, 0.0
    %v658 = vmax.f32 %v621, 0.0
    %v659 = vmax.f32 %v623, 0.0
    %v660 = vmax.f32 %v625, 0.0
    %v661 = vmax.f32 %v629, 0.0
    %v662 = vmax.f32 %v631, 0.0
    %v663 = vmax.f32 %v633, 0.0
    %v664 = vmax.f32 %v635, 0.0
    %v665 = vmax.f32 %v639, 0.0
    %v666 = vmax.f32 %v641, 0.0
    %v667 = vmax.f32 %v643, 0.0
    %v668 = vmax.f32 %v645, 0.0
    %v669 = vmax.f32 %v649, 0.0
    %v670 = vmax.f32 %v651, 0.0
    %v671 = vmax.f32 %v653, 0.0
    %v672 = vmax.f32 %v655, 0.0
    %v673 = vpack.c.bf16 %v659, %v657
    %v674 = vpack.c.bf16 %v660, %v658
    %v675 = vpack.c.bf16 %v663, %v661
    %v676 = vpack.c.bf16 %v664, %v662
    %v677 = vpack.c.bf16 %v667, %v665
    %v678 = vpack.c.bf16 %v668, %v666
    %v679 = vpack.c.bf16 %v671, %v669
    %v680 = vpack.c.bf16 %v672, %v670
    %v681 = vld [vmem:[%s7] sm:$0x1]
    %v682 = vpack.c.bf16 %v681, %v681
    %s683 = sld [smem:[#allocation2]]
    %v684 = vstv %s683
    %v686 = vsel %vm571, %v682, 0
    %688 = vmatprep.subr.bf16.mxu0 %v674
    %689 = vmatpush1.bf16.msra.mxu0 %v673
    %690 = vmatprep.subr.bf16.mxu0 %v676
    %691 = vmatpush1.bf16.msra.mxu0 %v675
    %692 = vmatprep.subr.bf16.mxu0 %v678
    %693 = vmatpush1.bf16.msra.mxu0 %v677
    %694 = vmatprep.subr.bf16.mxu0 %v680
    %695 = vmatpush1.bf16.msra.mxu0 %v679
    %696 = vmatprep.subr.bf16.mxu0 0
    %697 = vmatpush1.bf16.msra.mxu0 0
    %698 = vmatprep.subr.bf16.mxu0 0
    %699 = vmatpush1.bf16.msra.mxu0 0
    %700 = vmatprep.subr.bf16.mxu0 0
    %701 = vmatpush1.bf16.msra.mxu0 0
    %702 = vmatprep.subr.bf16.mxu0 0
    %703 = vmatpush1.bf16.msra.mxu0 0
    %704 = vmatprep.subr.bf16.mxu0 0
    %705 = vmatpush1.bf16.msra.mxu0 0
    %706 = vmatprep.subr.bf16.mxu0 0
    %707 = vmatpush1.bf16.msra.mxu0 0
    %708 = vmatprep.subr.bf16.mxu0 0
    %709 = vmatpush1.bf16.msra.mxu0 0
    %710 = vmatprep.subr.bf16.mxu0 0
    %711 = vmatpush1.bf16.msra.mxu0 0
    %712 = vmatprep.subr.bf16.mxu0 0
    %713 = vmatpush1.bf16.msra.mxu0 0
    %714 = vmatprep.subr.bf16.mxu0 0
    %715 = vmatpush1.bf16.msra.mxu0 0
    %716 = vmatprep.subr.bf16.mxu0 0
    %717 = vmatpush1.bf16.msra.mxu0 0
    %718 = vmatprep.subr.bf16.mxu0 0
    %719 = vmatpush1.bf16.msra.mxu0 0
    %720 = vmatprep.mubr.bf16.mxu0 0
    %721 = vmatmul.mubr.bf16.gmra.mrb[0].mxu0 %v686
    %v722 = vpop.f32.mrb[0].mxu0
    %v723 = vadd.f32 %v684, %v722
    %v724 = vpop.f32.mrb[0].mxu0
    %v725 = vadd.f32 %v684, %v724
    %v726 = vpop.f32.mrb[0].mxu0
    %v727 = vpop.f32.mrb[0].mxu0
    %728 = vdwg.mxu0
    %v731 = vcombine.low %v723, %v725
    %v733 = vunpack.c.l.s4 1966171168
    %v734 = vunpack.c.0.s8 %v733
    %v735 = vlaneseq
    %v736 = vshrl.u32 %v735, 7
    %v737 = vsub.s32 %v734, %v736
    %v738 = vrot.slane %v731, %v737
    %v740 = vunpack.c.l.s4 1966171168
    %v741 = vunpack.c.0.s8 %v740
    %v742 = vlaneseq
    %v743 = vshrl.u32 %v742, 7
    %v744 = vsub.s32 %v741, %v743
    %v745 = vrot.slane %v738, %v744
    %v747 = vlaneseq
    %vm748 = vcmp.ge.s32.totalorder %v747, 0
    %vm749 = vcmp.lt.s32.totalorder %v747, 256
    %vm750 = vmand %vm748, %vm749
    %751 = vst.msk [vmem:[#allocation3] sm:$0x3] %vm750, %v745
    // Predicated region
    $region38: #{tpu_custom_call.1} parent=1 // pred_check
      _
    $region39: #{tpu_custom_call.1} parent=1 // pred_check_branch
      %753 = sbr.rel (0) target = $region41
    $region40: #{tpu_custom_call.1} parent=1 // pred_region
      %s755 = ssub.s32 32, 32
      %756 = vsyncadd [#allocation4], %s755
      %s758 = sshll.u32 [#allocation3], 4
      %s759 = int_to_ptr.vmem [resolvable:$true] %s758
      %761 = dma.vmem_to_hbm [thread:$0]  %s759, 32, %s9, [#allocation4]
    $region41: #{tpu_custom_call.1} parent=1 // pred_fallthru
      _
    // Predicated region
    $region42: #{tpu_custom_call.1} parent=1 // pred_check
      _
    $region43: #{tpu_custom_call.1} parent=1 // pred_check_branch
      %763 = sbr.rel (0) target = $region45
    $region44: #{tpu_custom_call.1} parent=1 // pred_region
      %764 = dma.done [#allocation4], 32
    $region45: #{tpu_custom_call.1} parent=1 // pred_fallthru
      _
    %765 = vsyncpa [#allocation4], 1

</llo_original>
